<compile_context>
chip_gen: v7x
topology: tpu7x:2x2x1
jax: 0.10.0
libtpu: 0.0.40
codegen_flags: <defaults>
</compile_context>

<pallas_src>
import functools

import jax
import jax.numpy as jnp
from jax.experimental import pallas as pl
from jax.experimental.pallas import tpu as pltpu


def _gcod_kernel(logits_ref, targets_ref, gce_out, nsum_out, ncnt_out, *,
                 q, kk, threshold, label_smoothing, eps,
                 total_b, tile_b, tiles_per_chunk):
    p_id = pl.program_id(0)          # parallel chunk index (v7x: one per TC)
    t_id = pl.program_id(1)          # tile index within the chunk (sequential)

    # ---- init the per-chunk partial accumulators (output-resident) --------
    @pl.when(t_id == 0)
    def _init():
        gce_out[...] = jnp.zeros_like(gce_out)
        nsum_out[...] = jnp.zeros_like(nsum_out)
        ncnt_out[...] = jnp.zeros_like(ncnt_out)

    logits = logits_ref[...].astype(jnp.float32)              # (TB, C)
    targets = targets_ref[...]                                  # (TB, 1) int32
    tb, C = logits.shape

    # ---- valid-row mask (ragged last tile / clamped duplicate tile) -------
    g_tile = p_id * tiles_per_chunk + t_id                      # unclamped
    row = jax.lax.broadcasted_iota(jnp.int32, (tb, 1), 0) + g_tile * tile_b
    valid = row < total_b                                        # (TB, 1) bool

    # ---- clamp + stable softmax over the class (lane) axis ----------------
    x = jnp.clip(logits, -15.0, 15.0)
    m = jnp.max(x, axis=1, keepdims=True)
    e = jnp.exp(x - m)
    s = jnp.sum(e, axis=1, keepdims=True)
    p = e / s
    p = jnp.maximum(p, eps)          # p <= 1 already; upper clamp is redundant

    # ---- label-smoothed GCE term: no (TB,C) one-hot / smooth / weight tile -
    class_idx = jax.lax.broadcasted_iota(jnp.int32, (tb, C), 1)
    p_sum = jnp.sum(p, axis=1, keepdims=True)       # after eps clamp: not exactly 1
    p_tgt = jnp.sum(jnp.where(class_idx == targets, p, 0.0),
                    axis=1, keepdims=True)
    coef_all = label_smoothing / C
    coef_tgt = 1.0 - label_smoothing
    prod = jnp.maximum(coef_all * p_sum + coef_tgt * p_tgt, eps)   # (TB, 1)
    prod_q = jnp.exp(q * jnp.log(prod))              # prod ** q, prod > 0
    gce_rows = (1.0 - prod_q) / q                    # (TB, 1)
    gce_part = jnp.sum(jnp.where(valid, gce_rows, 0.0), keepdims=True)  # (1,1)

    # ---- sum of kk smallest confidences == kk - sum of kk largest p -------
    # Tie-invariant: mask every element equal to the current max and
    # compensate with a per-row count (exact for torch.topk SUM semantics).
    vals = p
    remaining = jnp.full((tb, 1), float(kk), jnp.float32)
    psum_topk = jnp.zeros((tb, 1), jnp.float32)
    for step in range(kk):
        mx = jnp.max(vals, axis=1, keepdims=True)
        eq = vals == mx
        cnt = jnp.sum(jnp.where(eq, 1.0, 0.0), axis=1, keepdims=True)
        take = jnp.minimum(cnt, remaining)
        psum_topk = psum_topk + take * mx
        remaining = remaining - take
        if step + 1 < kk:
            # finite sentinel (< eps <= p): 0 * (-inf) would be NaN once a
            # row's `remaining` hits 0 and all its elements are masked.
            vals = jnp.where(eq, -1.0, vals)
    topk_sum = kk - psum_topk                         # (TB, 1)

    # ---- outlier (noisy-sample) partials -----------------------------------
    noisy = jnp.logical_and(topk_sum < threshold, valid)          # (TB, 1)
    nsum_part = jnp.sum(jnp.where(noisy, topk_sum, 0.0), keepdims=True)
    ncnt_part = jnp.sum(jnp.where(noisy, 1.0, 0.0), keepdims=True)

    # ---- accumulate into the per-chunk output blocks -----------------------
    gce_out[...] = gce_out[...] + gce_part            # (1,1) broadcasts to (1,1,1)
    nsum_out[...] = nsum_out[...] + nsum_part
    ncnt_out[...] = ncnt_out[...] + ncnt_part


def _vmem_budget():
    """Generation-aware scoped-VMEM limit and per-tile working-set budget."""
    try:
        cap = int(pltpu.get_tpu_info().vmem_capacity_bytes)
    except Exception:
        cap = 64 * 1024 * 1024            # conservative fallback: v7x per-core VMEM
    # v7x (64 MiB)  -> 48 MiB scoped limit;  v5e/v6e (128 MiB) -> 96 MiB.
    limit = max(32 * 1024 * 1024, min((cap * 3) // 4, 96 * 1024 * 1024))
    tile_budget = int(limit * 0.85)       # headroom for Mosaic-internal scratch
    return limit, tile_budget


def _auto_tile_b(B, C, in_itemsize, tile_budget_bytes):
    # Per batch-row working set (bytes):
    #   2x double-buffered logits input            : 2 * C * itemsize
    #   2x double-buffered targets (lane-padded to (TB,128) i32) : 2 * 128 * 4
    #   ~7 simultaneously-live (TB, C) f32 arrays  : 7 * 4 * C
    per_row = 2 * C * in_itemsize + 2 * 128 * 4 + 7 * 4 * C
    tb = tile_budget_bytes // max(per_row, 1)
    tb = min(tb, 8192)                    # large tiles: per-step overhead < 10%
    tb = max(tb, 8)
    if tb >= B:
        return B
    return max(8, (tb // 8) * 8)          # sublane multiple when tiling


def gcod_loss(logits, targets, *, num_classes, q=0.449, k=3, gamma=1.46,
              threshold=0.42, label_smoothing=0.1, eps=1e-7,
              tile_b=None, num_chunks=2, vmem_limit_bytes=None):
    B, C = logits.shape
    assert C == num_classes
    kk = min(k, C)

    vmem_limit, tile_budget = _vmem_budget()
    if vmem_limit_bytes is None:
        vmem_limit_bytes = vmem_limit
    if tile_b is None:
        tile_b = _auto_tile_b(B, C, jnp.dtype(logits.dtype).itemsize, tile_budget)
    tile_b = min(tile_b, B)
    if tile_b < B:
        tile_b = max(8, (tile_b // 8) * 8)

    num_tiles = pl.cdiv(B, tile_b)
    # P parallel chunks: sharded across the 2 TensorCores on v7x; on 1-TC chips
    # the extra axis is the same sequential tile loop (at most one extra,
    # fully-masked, duplicate tile when P does not divide num_tiles).
    P = max(1, min(num_chunks, num_tiles))
    tiles_per_chunk = pl.cdiv(num_tiles, P)

    def in_map(pc, t):
        g = jnp.minimum(pc * tiles_per_chunk + t, num_tiles - 1)
        return (g, 0)

    def out_map(pc, t):
        return (pc, 0, 0)

    targets_2d = targets.astype(jnp.int32).reshape(B, 1)

    kernel = functools.partial(
        _gcod_kernel, q=q, kk=kk, threshold=threshold,
        label_smoothing=label_smoothing, eps=eps,
        total_b=B, tile_b=tile_b, tiles_per_chunk=tiles_per_chunk)

    part = jax.ShapeDtypeStruct((P, 1, 1), jnp.float32)
    gce_p, nsum_p, ncnt_p = pl.pallas_call(
        kernel,
        out_shape=(part, part, part),
        grid_spec=pltpu.PrefetchScalarGridSpec(
            num_scalar_prefetch=0,
            grid=(P, tiles_per_chunk),
            in_specs=[
                pl.BlockSpec((tile_b, C), in_map),
                pl.BlockSpec((tile_b, 1), in_map),
            ],
            out_specs=(
                pl.BlockSpec((1, 1, 1), out_map),
                pl.BlockSpec((1, 1, 1), out_map),
                pl.BlockSpec((1, 1, 1), out_map),
            ),
        ),
        compiler_params=pltpu.CompilerParams(
            dimension_semantics=("parallel", "arbitrary"),
            vmem_limit_bytes=vmem_limit_bytes),
    )(logits, targets_2d)                 # native dtype DMA; cast on load

    # ---- combine per-chunk partials (tiny XLA ops) --------------------------
    gce = jnp.sum(gce_p) / B
    nsum = jnp.sum(nsum_p)
    ncnt = jnp.sum(ncnt_p)
    outlier = jnp.where(ncnt > 0.0, nsum / (jnp.maximum(ncnt, 1.0) * kk), 0.0)
    return gce + gamma * outlier


def _gcod_loss_ref(logits, targets, *, num_classes, q=0.449, k=3, gamma=1.46,
                   threshold=0.42, label_smoothing=0.1, eps=1e-7):
    """Pure-JAX reference of the PyTorch forward, for verification."""
    one_hot = jax.nn.one_hot(targets, num_classes, dtype=jnp.float32)
    smooth = (1.0 - label_smoothing) * one_hot + label_smoothing / num_classes
    lg = jnp.clip(logits.astype(jnp.float32), -15.0, 15.0)
    p = jax.nn.softmax(lg, axis=1)
    p = jnp.clip(p, eps, 1.0)
    prod = jnp.clip(jnp.sum(p * smooth, axis=1), eps, None)
    gce = jnp.mean((1.0 - prod ** q) / q)
    conf = 1.0 - p
    kk = min(k, num_classes)
    smallest_k = jnp.sort(conf, axis=1)[:, :kk]
    row_sum = jnp.sum(smallest_k, axis=1)
    noisy = row_sum < threshold
    n_noisy = jnp.sum(noisy.astype(jnp.float32))
    outlier = jnp.where(
        n_noisy > 0,
        jnp.sum(jnp.where(noisy[:, None], smallest_k, 0.0)) /
        (jnp.maximum(n_noisy, 1.0) * kk),
        0.0)
    return gce + gamma * outlier


if __name__ == "__main__":
    key = jax.random.PRNGKey(0)
    k_logits, k_targets = jax.random.split(key)

    B, C = 50, 128
    logits = jax.random.normal(k_logits, (B, C), dtype=jnp.float32) * 3.0
    # make half the rows highly confident so the outlier branch is exercised
    logits = logits.at[::2, 0].add(12.0)
    targets = jax.random.randint(k_targets, (B,), 0, C, dtype=jnp.int32)

    # Test 1: defaults, forced small tile -> exercises batch tiling, the
    # ragged last tile, and the two-chunk parallel axis (with one clamped
    # duplicate tile that must be fully masked out).
    loss = gcod_loss(logits, targets, num_classes=C, tile_b=8)
    loss = jax.block_until_ready(loss)
    ref = _gcod_loss_ref(logits, targets, num_classes=C)
    assert jnp.allclose(loss, ref, rtol=1e-5, atol=1e-5), (loss, ref)

    # Test 2: k=1 / higher threshold so rows are flagged noisy and the outlier
    # accumulation path is verified end-to-end; auto tile size (single tile).
    loss2 = gcod_loss(logits, targets, num_classes=C, k=1, threshold=0.6)
    loss2 = jax.block_until_ready(loss2)
    ref2 = _gcod_loss_ref(logits, targets, num_classes=C, k=1, threshold=0.6)
    assert jnp.allclose(loss2, ref2, rtol=1e-5, atol=1e-5), (loss2, ref2)

    print("KERNEL_OK")
</pallas_src>

<mosaic_0001>
module attributes {stable_mosaic.version = 11 : i64} {
  func.func @_gcod_kernel(%arg0: i32, %arg1: i32, %arg2: memref<8x128xf32, #tpu.memory_space<vmem>>, %arg3: memref<8x1xi32, #tpu.memory_space<vmem>>, %arg4: memref<1x1x1xf32, #tpu.memory_space<vmem>>, %arg5: memref<1x1x1xf32, #tpu.memory_space<vmem>>, %arg6: memref<1x1x1xf32, #tpu.memory_space<vmem>>) attributes {dimension_semantics = [#tpu.dimension_semantics<parallel>, #tpu.dimension_semantics<arbitrary>], iteration_bounds = array<i64: 2, 4>, scalar_prefetch = 0 : i64, scratch_operands = 0 : i64, tpu.core_type = #tpu.core_type<tc>, window_params = [{transform_indices = @transform_0, window_bounds = array<i64: 8, 128>}, {transform_indices = @transform_1, window_bounds = array<i64: 8, 1>}, {transform_indices = @transform_2, window_bounds = array<i64: 1, 1, 1>}, {transform_indices = @transform_3, window_bounds = array<i64: 1, 1, 1>}, {transform_indices = @transform_4, window_bounds = array<i64: 1, 1, 1>}]} {
    %c0_i32 = arith.constant 0 : i32
    %0 = arith.cmpi eq, %arg1, %c0_i32 : i32
    %1 = arith.extui %0 : i1 to i32
    %c0_i32_0 = arith.constant 0 : i32
    %2 = arith.cmpi ne, %1, %c0_i32_0 : i32
    scf.if %2 {
      %cst_60 = arith.constant 0.000000e+00 : f32
      %135 = vector.broadcast %cst_60 : f32 to vector<1x1x1xf32>
      %c0_61 = arith.constant 0 : index
      %c0_62 = arith.constant 0 : index
      %c0_63 = arith.constant 0 : index
      %136 = vector.load %arg4[%c0_61, %c0_62, %c0_63] : memref<1x1x1xf32, #tpu.memory_space<vmem>>, vector<1x1x1xf32>
      tpu.vector_store %arg4[%c0_61, %c0_62, %c0_63], %135 {strides = array<i32>} : memref<1x1x1xf32, #tpu.memory_space<vmem>>, vector<1x1x1xf32>,
      %cst_64 = arith.constant 0.000000e+00 : f32
      %137 = vector.broadcast %cst_64 : f32 to vector<1x1x1xf32>
      %c0_65 = arith.constant 0 : index
      %c0_66 = arith.constant 0 : index
      %c0_67 = arith.constant 0 : index
      %138 = vector.load %arg5[%c0_65, %c0_66, %c0_67] : memref<1x1x1xf32, #tpu.memory_space<vmem>>, vector<1x1x1xf32>
      tpu.vector_store %arg5[%c0_65, %c0_66, %c0_67], %137 {strides = array<i32>} : memref<1x1x1xf32, #tpu.memory_space<vmem>>, vector<1x1x1xf32>,
      %cst_68 = arith.constant 0.000000e+00 : f32
      %139 = vector.broadcast %cst_68 : f32 to vector<1x1x1xf32>
      %c0_69 = arith.constant 0 : index
      %c0_70 = arith.constant 0 : index
      %c0_71 = arith.constant 0 : index
      %140 = vector.load %arg6[%c0_69, %c0_70, %c0_71] : memref<1x1x1xf32, #tpu.memory_space<vmem>>, vector<1x1x1xf32>
      tpu.vector_store %arg6[%c0_69, %c0_70, %c0_71], %139 {strides = array<i32>} : memref<1x1x1xf32, #tpu.memory_space<vmem>>, vector<1x1x1xf32>,
    } else {
    }
    %c0 = arith.constant 0 : index
    %c0_1 = arith.constant 0 : index
    %3 = vector.load %arg2[%c0, %c0_1] : memref<8x128xf32, #tpu.memory_space<vmem>>, vector<8x128xf32>
    %c0_2 = arith.constant 0 : index
    %c0_3 = arith.constant 0 : index
    %4 = vector.load %arg3[%c0_2, %c0_3] : memref<8x1xi32, #tpu.memory_space<vmem>>, vector<8x1xi32>
    %c4_i32 = arith.constant 4 : i32
    %5 = arith.muli %arg0, %c4_i32 : i32
    %6 = arith.addi %5, %arg1 : i32
    %7 = tpu.iota {dimensions = array<i32: 0>} : vector<8x1xi32>
    %c8_i32 = arith.constant 8 : i32
    %8 = arith.muli %6, %c8_i32 : i32
    %9 = vector.broadcast %8 : i32 to vector<8x1xi32>
    %10 = arith.addi %7, %9 : vector<8x1xi32>
    %c50_i32 = arith.constant 50 : i32
    %11 = vector.broadcast %c50_i32 : i32 to vector<8x1xi32>
    %12 = arith.cmpi slt, %10, %11 : vector<8x1xi32>
    %cst = arith.constant -1.500000e+01 : f32
    %cst_4 = arith.constant 1.500000e+01 : f32
    %13 = vector.broadcast %cst : f32 to vector<8x128xf32>
    %14 = arith.maximumf %13, %3 : vector<8x128xf32>
    %15 = vector.broadcast %cst_4 : f32 to vector<8x128xf32>
    %16 = arith.minimumf %15, %14 : vector<8x128xf32>
    %cst_5 = arith.constant dense<0xFF800000> : vector<8xf32>
    %17 = vector.multi_reduction <maximumf>, %16, %cst_5 [1] : vector<8x128xf32> to vector<8xf32>
    %18 = vector.shape_cast %17 : vector<8xf32> to vector<8x1xf32>
    %19 = vector.broadcast %18 : vector<8x1xf32> to vector<8x128xf32>
    %20 = arith.subf %16, %19 : vector<8x128xf32>
    %21 = math.exp %20 : vector<8x128xf32>
    %cst_6 = arith.constant dense<0.000000e+00> : vector<8xf32>
    %22 = vector.multi_reduction <add>, %21, %cst_6 [1] : vector<8x128xf32> to vector<8xf32>
    %23 = vector.shape_cast %22 : vector<8xf32> to vector<8x1xf32>
    %24 = vector.broadcast %23 : vector<8x1xf32> to vector<8x128xf32>
    %25 = arith.divf %21, %24 : vector<8x128xf32>
    %cst_7 = arith.constant 1.000000e-07 : f32
    %26 = vector.broadcast %cst_7 : f32 to vector<8x128xf32>
    %27 = arith.maximumf %25, %26 : vector<8x128xf32>
    %28 = tpu.iota {dimensions = array<i32: 1>} : vector<8x128xi32>
    %cst_8 = arith.constant dense<0.000000e+00> : vector<8xf32>
    %29 = vector.multi_reduction <add>, %27, %cst_8 [1] : vector<8x128xf32> to vector<8xf32>
    %30 = vector.shape_cast %29 : vector<8xf32> to vector<8x1xf32>
    %31 = vector.broadcast %4 : vector<8x1xi32> to vector<8x128xi32>
    %32 = arith.cmpi eq, %28, %31 : vector<8x128xi32>
    %cst_9 = arith.constant 0.000000e+00 : f32
    %33 = vector.broadcast %cst_9 : f32 to vector<8x128xf32>
    %34 = arith.select %32, %27, %33 : vector<8x128xi1>, vector<8x128xf32>
    %cst_10 = arith.constant dense<0.000000e+00> : vector<8xf32>
    %35 = vector.multi_reduction <add>, %34, %cst_10 [1] : vector<8x128xf32> to vector<8xf32>
    %36 = vector.shape_cast %35 : vector<8xf32> to vector<8x1xf32>
    %cst_11 = arith.constant 7.812500e-04 : f32
    %37 = vector.broadcast %cst_11 : f32 to vector<8x1xf32>
    %38 = arith.mulf %37, %30 : vector<8x1xf32>
    %cst_12 = arith.constant 0.899999976 : f32
    %39 = vector.broadcast %cst_12 : f32 to vector<8x1xf32>
    %40 = arith.mulf %39, %36 : vector<8x1xf32>
    %41 = arith.addf %38, %40 : vector<8x1xf32>
    %cst_13 = arith.constant 1.000000e-07 : f32
    %42 = vector.broadcast %cst_13 : f32 to vector<8x1xf32>
    %43 = arith.maximumf %41, %42 : vector<8x1xf32>
    %44 = math.log %43 : vector<8x1xf32>
    %cst_14 = arith.constant 4.490000e-01 : f32
    %45 = vector.broadcast %cst_14 : f32 to vector<8x1xf32>
    %46 = arith.mulf %45, %44 : vector<8x1xf32>
    %47 = math.exp %46 : vector<8x1xf32>
    %cst_15 = arith.constant 1.000000e+00 : f32
    %48 = vector.broadcast %cst_15 : f32 to vector<8x1xf32>
    %49 = arith.subf %48, %47 : vector<8x1xf32>
    %cst_16 = arith.constant 4.490000e-01 : f32
    %50 = vector.broadcast %cst_16 : f32 to vector<8x1xf32>
    %51 = arith.divf %49, %50 : vector<8x1xf32>
    %cst_17 = arith.constant 0.000000e+00 : f32
    %52 = vector.broadcast %cst_17 : f32 to vector<8x1xf32>
    %53 = arith.select %12, %51, %52 : vector<8x1xi1>, vector<8x1xf32>
    %54 = vector.shape_cast %53 : vector<8x1xf32> to vector<1x8x1xf32>
    %cst_18 = arith.constant dense<0.000000e+00> : vector<1xf32>
    %55 = vector.multi_reduction <add>, %54, %cst_18 [1, 2] : vector<1x8x1xf32> to vector<1xf32>
    %56 = vector.shape_cast %55 : vector<1xf32> to vector<1x1x1xf32>
    %57 = vector.extract %56[0, 0, 0] : f32 from vector<1x1x1xf32>
    %58 = vector.broadcast %57 : f32 to vector<1x1xf32>
    %cst_19 = arith.constant 3.000000e+00 : f32
    %59 = vector.broadcast %cst_19 : f32 to vector<8x1xf32>
    %cst_20 = arith.constant 0.000000e+00 : f32
    %60 = vector.broadcast %cst_20 : f32 to vector<8x1xf32>
    %cst_21 = arith.constant dense<0xFF800000> : vector<8xf32>
    %61 = vector.multi_reduction <maximumf>, %27, %cst_21 [1] : vector<8x128xf32> to vector<8xf32>
    %62 = vector.shape_cast %61 : vector<8xf32> to vector<8x1xf32>
    %63 = vector.broadcast %62 : vector<8x1xf32> to vector<8x128xf32>
    %64 = arith.cmpf oeq, %27, %63 : vector<8x128xf32>
    %cst_22 = arith.constant 1.000000e+00 : f32
    %cst_23 = arith.constant 0.000000e+00 : f32
    %65 = vector.broadcast %cst_22 : f32 to vector<8x128xf32>
    %66 = vector.broadcast %cst_23 : f32 to vector<8x128xf32>
    %67 = arith.select %64, %65, %66 : vector<8x128xi1>, vector<8x128xf32>
    %cst_24 = arith.constant dense<0.000000e+00> : vector<8xf32>
    %68 = vector.multi_reduction <add>, %67, %cst_24 [1] : vector<8x128xf32> to vector<8xf32>
    %69 = vector.shape_cast %68 : vector<8xf32> to vector<8x1xf32>
    %70 = arith.minimumf %69, %59 : vector<8x1xf32>
    %71 = arith.mulf %70, %62 : vector<8x1xf32>
    %72 = arith.addf %60, %71 : vector<8x1xf32>
    %73 = arith.subf %59, %70 : vector<8x1xf32>
    %cst_25 = arith.constant -1.000000e+00 : f32
    %74 = vector.broadcast %cst_25 : f32 to vector<8x128xf32>
    %75 = arith.select %64, %74, %27 : vector<8x128xi1>, vector<8x128xf32>
    %cst_26 = arith.constant dense<0xFF800000> : vector<8xf32>
    %76 = vector.multi_reduction <maximumf>, %75, %cst_26 [1] : vector<8x128xf32> to vector<8xf32>
    %77 = vector.shape_cast %76 : vector<8xf32> to vector<8x1xf32>
    %78 = vector.broadcast %77 : vector<8x1xf32> to vector<8x128xf32>
    %79 = arith.cmpf oeq, %75, %78 : vector<8x128xf32>
    %cst_27 = arith.constant 1.000000e+00 : f32
    %cst_28 = arith.constant 0.000000e+00 : f32
    %80 = vector.broadcast %cst_27 : f32 to vector<8x128xf32>
    %81 = vector.broadcast %cst_28 : f32 to vector<8x128xf32>
    %82 = arith.select %79, %80, %81 : vector<8x128xi1>, vector<8x128xf32>
    %cst_29 = arith.constant dense<0.000000e+00> : vector<8xf32>
    %83 = vector.multi_reduction <add>, %82, %cst_29 [1] : vector<8x128xf32> to vector<8xf32>
    %84 = vector.shape_cast %83 : vector<8xf32> to vector<8x1xf32>
    %85 = arith.minimumf %84, %73 : vector<8x1xf32>
    %86 = arith.mulf %85, %77 : vector<8x1xf32>
    %87 = arith.addf %72, %86 : vector<8x1xf32>
    %88 = arith.subf %73, %85 : vector<8x1xf32>
    %cst_30 = arith.constant -1.000000e+00 : f32
    %89 = vector.broadcast %cst_30 : f32 to vector<8x128xf32>
    %90 = arith.select %79, %89, %75 : vector<8x128xi1>, vector<8x128xf32>
    %cst_31 = arith.constant dense<0xFF800000> : vector<8xf32>
    %91 = vector.multi_reduction <maximumf>, %90, %cst_31 [1] : vector<8x128xf32> to vector<8xf32>
    %92 = vector.shape_cast %91 : vector<8xf32> to vector<8x1xf32>
    %93 = vector.broadcast %92 : vector<8x1xf32> to vector<8x128xf32>
    %94 = arith.cmpf oeq, %90, %93 : vector<8x128xf32>
    %cst_32 = arith.constant 1.000000e+00 : f32
    %cst_33 = arith.constant 0.000000e+00 : f32
    %95 = vector.broadcast %cst_32 : f32 to vector<8x128xf32>
    %96 = vector.broadcast %cst_33 : f32 to vector<8x128xf32>
    %97 = arith.select %94, %95, %96 : vector<8x128xi1>, vector<8x128xf32>
    %cst_34 = arith.constant dense<0.000000e+00> : vector<8xf32>
    %98 = vector.multi_reduction <add>, %97, %cst_34 [1] : vector<8x128xf32> to vector<8xf32>
    %99 = vector.shape_cast %98 : vector<8xf32> to vector<8x1xf32>
    %100 = arith.minimumf %99, %88 : vector<8x1xf32>
    %101 = arith.mulf %100, %92 : vector<8x1xf32>
    %102 = arith.addf %87, %101 : vector<8x1xf32>
    %cst_35 = arith.constant 3.000000e+00 : f32
    %103 = vector.broadcast %cst_35 : f32 to vector<8x1xf32>
    %104 = arith.subf %103, %102 : vector<8x1xf32>
    %cst_36 = arith.constant 4.200000e-01 : f32
    %105 = vector.broadcast %cst_36 : f32 to vector<8x1xf32>
    %106 = arith.cmpf olt, %104, %105 : vector<8x1xf32>
    %107 = arith.andi %106, %12 : vector<8x1xi1>
    %cst_37 = arith.constant 0.000000e+00 : f32
    %108 = vector.broadcast %cst_37 : f32 to vector<8x1xf32>
    %109 = arith.select %107, %104, %108 : vector<8x1xi1>, vector<8x1xf32>
    %110 = vector.shape_cast %109 : vector<8x1xf32> to vector<1x8x1xf32>
    %cst_38 = arith.constant dense<0.000000e+00> : vector<1xf32>
    %111 = vector.multi_reduction <add>, %110, %cst_38 [1, 2] : vector<1x8x1xf32> to vector<1xf32>
    %112 = vector.shape_cast %111 : vector<1xf32> to vector<1x1x1xf32>
    %113 = vector.extract %112[0, 0, 0] : f32 from vector<1x1x1xf32>
    %114 = vector.broadcast %113 : f32 to vector<1x1xf32>
    %cst_39 = arith.constant 1.000000e+00 : f32
    %cst_40 = arith.constant 0.000000e+00 : f32
    %115 = vector.broadcast %cst_39 : f32 to vector<8x1xf32>
    %116 = vector.broadcast %cst_40 : f32 to vector<8x1xf32>
    %117 = arith.select %107, %115, %116 : vector<8x1xi1>, vector<8x1xf32>
    %118 = vector.shape_cast %117 : vector<8x1xf32> to vector<1x8x1xf32>
    %cst_41 = arith.constant dense<0.000000e+00> : vector<1xf32>
    %119 = vector.multi_reduction <add>, %118, %cst_41 [1, 2] : vector<1x8x1xf32> to vector<1xf32>
    %120 = vector.shape_cast %119 : vector<1xf32> to vector<1x1x1xf32>
    %121 = vector.extract %120[0, 0, 0] : f32 from vector<1x1x1xf32>
    %122 = vector.broadcast %121 : f32 to vector<1x1xf32>
    %c0_42 = arith.constant 0 : index
    %c0_43 = arith.constant 0 : index
    %c0_44 = arith.constant 0 : index
    %123 = vector.load %arg4[%c0_42, %c0_43, %c0_44] : memref<1x1x1xf32, #tpu.memory_space<vmem>>, vector<1x1x1xf32>
    %124 = vector.shape_cast %58 : vector<1x1xf32> to vector<1x1x1xf32>
    %125 = arith.addf %123, %124 : vector<1x1x1xf32>
    %c0_45 = arith.constant 0 : index
    %c0_46 = arith.constant 0 : index
    %c0_47 = arith.constant 0 : index
    %126 = vector.load %arg4[%c0_45, %c0_46, %c0_47] : memref<1x1x1xf32, #tpu.memory_space<vmem>>, vector<1x1x1xf32>
    tpu.vector_store %arg4[%c0_45, %c0_46, %c0_47], %125 {strides = array<i32>} : memref<1x1x1xf32, #tpu.memory_space<vmem>>, vector<1x1x1xf32>,
    %c0_48 = arith.constant 0 : index
    %c0_49 = arith.constant 0 : index
    %c0_50 = arith.constant 0 : index
    %127 = vector.load %arg5[%c0_48, %c0_49, %c0_50] : memref<1x1x1xf32, #tpu.memory_space<vmem>>, vector<1x1x1xf32>
    %128 = vector.shape_cast %114 : vector<1x1xf32> to vector<1x1x1xf32>
    %129 = arith.addf %127, %128 : vector<1x1x1xf32>
    %c0_51 = arith.constant 0 : index
    %c0_52 = arith.constant 0 : index
    %c0_53 = arith.constant 0 : index
    %130 = vector.load %arg5[%c0_51, %c0_52, %c0_53] : memref<1x1x1xf32, #tpu.memory_space<vmem>>, vector<1x1x1xf32>
    tpu.vector_store %arg5[%c0_51, %c0_52, %c0_53], %129 {strides = array<i32>} : memref<1x1x1xf32, #tpu.memory_space<vmem>>, vector<1x1x1xf32>,
    %c0_54 = arith.constant 0 : index
    %c0_55 = arith.constant 0 : index
    %c0_56 = arith.constant 0 : index
    %131 = vector.load %arg6[%c0_54, %c0_55, %c0_56] : memref<1x1x1xf32, #tpu.memory_space<vmem>>, vector<1x1x1xf32>
    %132 = vector.shape_cast %122 : vector<1x1xf32> to vector<1x1x1xf32>
    %133 = arith.addf %131, %132 : vector<1x1x1xf32>
    %c0_57 = arith.constant 0 : index
    %c0_58 = arith.constant 0 : index
    %c0_59 = arith.constant 0 : index
    %134 = vector.load %arg6[%c0_57, %c0_58, %c0_59] : memref<1x1x1xf32, #tpu.memory_space<vmem>>, vector<1x1x1xf32>
    tpu.vector_store %arg6[%c0_57, %c0_58, %c0_59], %133 {strides = array<i32>} : memref<1x1x1xf32, #tpu.memory_space<vmem>>, vector<1x1x1xf32>,
    return
  }
  func.func @transform_0(%arg0: i32, %arg1: i32) -> (i32, i32) {
    %c4_i32 = arith.constant 4 : i32
    %0 = arith.muli %arg0, %c4_i32 : i32
    %1 = arith.addi %0, %arg1 : i32
    %c6_i32 = arith.constant 6 : i32
    %2 = arith.minsi %1, %c6_i32 : i32
    %c0_i32 = arith.constant 0 : i32
    %c0_i32_0 = arith.constant 0 : i32
    return %2, %c0_i32 : i32, i32
  }
  func.func @transform_1(%arg0: i32, %arg1: i32) -> (i32, i32) {
    %c4_i32 = arith.constant 4 : i32
    %0 = arith.muli %arg0, %c4_i32 : i32
    %1 = arith.addi %0, %arg1 : i32
    %c6_i32 = arith.constant 6 : i32
    %2 = arith.minsi %1, %c6_i32 : i32
    %c0_i32 = arith.constant 0 : i32
    %c0_i32_0 = arith.constant 0 : i32
    return %2, %c0_i32 : i32, i32
  }
  func.func @transform_2(%arg0: i32, %arg1: i32) -> (i32, i32, i32) {
    %c0_i32 = arith.constant 0 : i32
    %c0_i32_0 = arith.constant 0 : i32
    %c0_i32_1 = arith.constant 0 : i32
    return %arg0, %c0_i32, %c0_i32_0 : i32, i32, i32
  }
  func.func @transform_3(%arg0: i32, %arg1: i32) -> (i32, i32, i32) {
    %c0_i32 = arith.constant 0 : i32
    %c0_i32_0 = arith.constant 0 : i32
    %c0_i32_1 = arith.constant 0 : i32
    return %arg0, %c0_i32, %c0_i32_0 : i32, i32, i32
  }
  func.func @transform_4(%arg0: i32, %arg1: i32) -> (i32, i32, i32) {
    %c0_i32 = arith.constant 0 : i32
    %c0_i32_0 = arith.constant 0 : i32
    %c0_i32_1 = arith.constant 0 : i32
    return %arg0, %c0_i32, %c0_i32_0 : i32, i32, i32
  }
}

</mosaic_0001>

<llo_original>
// kernel: tpu_custom_call.1
$region0: #{tpu_custom_call.1}
  #allocation0 [shape = 'u32[]', space=smem, size = 0x4, offset = 0x4, fixed_abs, tag = 'smem constant byte address 0x4 - core index']
  #allocation1 [shape = 'u32[144,128]{1,0:T(1,128)}', space=vmem, size = 0x12000, scoped, tag = 'internal scratch']
  %s0 = inlined_call_operand.vmem [shape: f32[50,128], index: 0, kind: input, shape index: {}]
  %s1 = inlined_call_operand.vmem [shape: s32[50,1], index: 1, kind: input, shape index: {}]
  %s2 = inlined_call_operand.vmem [shape: f32[2,1,1], index: 2, kind: output, shape index: {0}]
  %s3 = inlined_call_operand.vmem [shape: f32[2,1,1], index: 3, kind: output, shape index: {1}]
  %s4 = inlined_call_operand.vmem [shape: f32[2,1,1], index: 4, kind: output, shape index: {2}]
  %5 = xla_tuple %s2, %s3, %s4
  %s6 = sld [smem:[#allocation0]]
  $region61: #{tpu_custom_call.1} parent=0
    _
  %s8 = ssub.s32 1, %s6
  %s9 = scalar_select 0, %s8, %s6
  loop: start=0, step=1, limit=10
  $region2: #{tpu_custom_call.1} parent=0 // loop_pre_header
    _
  $region3: #{tpu_custom_call.1} parent=0 // loop_header
    %s11 = sphi 0, %s15
    %p12 = scmp.ge.s32.totalorder %s11, 10
    %s18 = sphi 0, %s30
    %s19 = sphi 0, %s26
    %s20 = sphi 0, %s18
    %s21 = sphi 0, %s19
    %s22 = sphi 0, %s20
    %s23 = sphi 0, %s21
    %s41 = sphi 0, %s43
    %s44 = sphi 0, %s41
    %s45 = sphi 0, %s44
    %s61 = sphi 0, %s45
    %s75 = sphi 0, %s77
    %s78 = sphi 0, %s75
    %s79 = sphi 0, %s78
    %s95 = sphi 0, %s79
    %s101 = sphi 0, %s103
    %s104 = sphi 0, %s101
    %s105 = sphi 0, %s104
    %s121 = sphi 0, %s105
    %s127 = sphi 0, %s129
    %s130 = sphi 0, %s127
    %s131 = sphi 0, %s130
    %s147 = sphi 0, %s131
    %s153 = sphi 0, %s155
    %s156 = sphi 0, %s153
    %s157 = sphi 0, %s156
    %s173 = sphi 0, %s157
  $region4: #{tpu_custom_call.1} parent=0 // loop_header_branch
    %14 = sbr.rel (%p12) target = $region8
  $region5: #{tpu_custom_call.1} parent=0 // loop_body
    %s16 = ssub.s32 %s11, 1
    %s17 = ssub.s32 %s11, 2
    %s24 = sadd.s32 1, %s19
    %p25 = scmp.ge.s32.totalorder %s24, 4
    %s26 = scalar_select %p25, 0, %s24
    %s27 = sadd.s32 1, %s18
    %s28 = scalar_select %p25, %s27, %s18
    %p29 = scmp.ge.s32.totalorder %s28, 2
    %s30 = scalar_select %p29, 0, %s28
    %s31 = smul.u32 %s18, 4
    %s32 = sadd.s32 %s31, %s19
    %p33 = scmp.lt.s32.totalorder %s32, 6
    %s34 = scalar_select %p33, %s32, 6
    %s35 = smul.u32 %s30, 4
    %s36 = sadd.s32 %s35, %s26
    %p37 = scmp.lt.s32.totalorder %s36, 6
    %s38 = scalar_select %p37, %s36, 6
    %s39 = ssub.s32 %s34, %s38
    %p40 = scmp.eq.s32.totalorder %s39, 0
    %s42 = sadd.s32 %s41, 1
    %s43 = scalar_select %p40, %s41, %s42
    %p46 = pneg %p40
    %p47 = scmp.eq.s32.totalorder %s11, 7
    %p48 = por %p46, %p47
    %p49 = scmp.ne.s32.totalorder %s41, %s44
    %p50 = scmp.eq.s32.totalorder %s11, 0
    %p51 = por %p49, %p50
    %p52 = scmp.ne.s32.totalorder %s41, %s44
    %p53 = scmp.eq.s32.totalorder %s16, 7
    %p54 = por %p52, %p53
    %p55 = scmp.ne.s32.totalorder %s44, %s45
    %p56 = scmp.eq.s32.totalorder %s16, 0
    %p57 = por %p55, %p56
    %p58 = scmp.ne.s32.totalorder %s44, %s45
    %p59 = scmp.eq.s32.totalorder %s17, 7
    %p60 = por %p58, %p59
    %p62 = scmp.ne.s32.totalorder %s45, %s61
    %p63 = scmp.eq.s32.totalorder %s17, 0
    %p64 = por %p62, %p63
    %s65 = smul.u32 %s18, 4
    %s66 = sadd.s32 %s65, %s19
    %p67 = scmp.lt.s32.totalorder %s66, 6
    %s68 = scalar_select %p67, %s66, 6
    %s69 = smul.u32 %s30, 4
    %s70 = sadd.s32 %s69, %s26
    %p71 = scmp.lt.s32.totalorder %s70, 6
    %s72 = scalar_select %p71, %s70, 6
    %s73 = ssub.s32 %s68, %s72
    %p74 = scmp.eq.s32.totalorder %s73, 0
    %s76 = sadd.s32 %s75, 1
    %s77 = scalar_select %p74, %s75, %s76
    %p80 = pneg %p74
    %p81 = scmp.eq.s32.totalorder %s11, 7
    %p82 = por %p80, %p81
    %p83 = scmp.ne.s32.totalorder %s75, %s78
    %p84 = scmp.eq.s32.totalorder %s11, 0
    %p85 = por %p83, %p84
    %p86 = scmp.ne.s32.totalorder %s75, %s78
    %p87 = scmp.eq.s32.totalorder %s16, 7
    %p88 = por %p86, %p87
    %p89 = scmp.ne.s32.totalorder %s78, %s79
    %p90 = scmp.eq.s32.totalorder %s16, 0
    %p91 = por %p89, %p90
    %p92 = scmp.ne.s32.totalorder %s78, %s79
    %p93 = scmp.eq.s32.totalorder %s17, 7
    %p94 = por %p92, %p93
    %p96 = scmp.ne.s32.totalorder %s79, %s95
    %p97 = scmp.eq.s32.totalorder %s17, 0
    %p98 = por %p96, %p97
    %s99 = ssub.s32 %s18, %s30
    %p100 = scmp.eq.s32.totalorder %s99, 0
    %s102 = sadd.s32 %s101, 1
    %s103 = scalar_select %p100, %s101, %s102
    %p106 = pneg %p100
    %p107 = scmp.eq.s32.totalorder %s11, 7
    %p108 = por %p106, %p107
    %p109 = scmp.ne.s32.totalorder %s101, %s104
    %p110 = scmp.eq.s32.totalorder %s11, 0
    %p111 = por %p109, %p110
    %p112 = scmp.ne.s32.totalorder %s101, %s104
    %p113 = scmp.eq.s32.totalorder %s16, 7
    %p114 = por %p112, %p113
    %p115 = scmp.ne.s32.totalorder %s104, %s105
    %p116 = scmp.eq.s32.totalorder %s16, 0
    %p117 = por %p115, %p116
    %p118 = scmp.ne.s32.totalorder %s104, %s105
    %p119 = scmp.eq.s32.totalorder %s17, 7
    %p120 = por %p118, %p119
    %p122 = scmp.ne.s32.totalorder %s105, %s121
    %p123 = scmp.eq.s32.totalorder %s17, 0
    %p124 = por %p122, %p123
    %s125 = ssub.s32 %s18, %s30
    %p126 = scmp.eq.s32.totalorder %s125, 0
    %s128 = sadd.s32 %s127, 1
    %s129 = scalar_select %p126, %s127, %s128
    %p132 = pneg %p126
    %p133 = scmp.eq.s32.totalorder %s11, 7
    %p134 = por %p132, %p133
    %p135 = scmp.ne.s32.totalorder %s127, %s130
    %p136 = scmp.eq.s32.totalorder %s11, 0
    %p137 = por %p135, %p136
    %p138 = scmp.ne.s32.totalorder %s127, %s130
    %p139 = scmp.eq.s32.totalorder %s16, 7
    %p140 = por %p138, %p139
    %p141 = scmp.ne.s32.totalorder %s130, %s131
    %p142 = scmp.eq.s32.totalorder %s16, 0
    %p143 = por %p141, %p142
    %p144 = scmp.ne.s32.totalorder %s130, %s131
    %p145 = scmp.eq.s32.totalorder %s17, 7
    %p146 = por %p144, %p145
    %p148 = scmp.ne.s32.totalorder %s131, %s147
    %p149 = scmp.eq.s32.totalorder %s17, 0
    %p150 = por %p148, %p149
    %s151 = ssub.s32 %s18, %s30
    %p152 = scmp.eq.s32.totalorder %s151, 0
    %s154 = sadd.s32 %s153, 1
    %s155 = scalar_select %p152, %s153, %s154
    %p158 = pneg %p152
    %p159 = scmp.eq.s32.totalorder %s11, 7
    %p160 = por %p158, %p159
    %p161 = scmp.ne.s32.totalorder %s153, %s156
    %p162 = scmp.eq.s32.totalorder %s11, 0
    %p163 = por %p161, %p162
    %p164 = scmp.ne.s32.totalorder %s153, %s156
    %p165 = scmp.eq.s32.totalorder %s16, 7
    %p166 = por %p164, %p165
    %p167 = scmp.ne.s32.totalorder %s156, %s157
    %p168 = scmp.eq.s32.totalorder %s16, 0
    %p169 = por %p167, %p168
    %p170 = scmp.ne.s32.totalorder %s156, %s157
    %p171 = scmp.eq.s32.totalorder %s17, 7
    %p172 = por %p170, %p171
    %p174 = scmp.ne.s32.totalorder %s157, %s173
    %p175 = scmp.eq.s32.totalorder %s17, 0
    %p176 = por %p174, %p175
    %p177 = scmp.le.s32.totalorder 1, %s11
    %p178 = scmp.lt.s32.totalorder %s11, 9
    %p179 = pnand %p177, %p178
    %p180 = pneg %p179
    // Predicated region
    $region9: #{tpu_custom_call.1} parent=5 // pred_check
      _
    $region10: #{tpu_custom_call.1} parent=5 // pred_check_branch
      %182 = sbr.rel (%p179) target = $region12
    $region11: #{tpu_custom_call.1} parent=5 // pred_region
      %s183 = ssub.s32 %s11, 1
    $region12: #{tpu_custom_call.1} parent=5 // pred_fallthru
      _
    %p184 = scmp.lt.s32.totalorder %s11, 8
    // Predicated region
    $region13: #{tpu_custom_call.1} parent=5 // pred_check
      %p185 = pneg %p184
    $region14: #{tpu_custom_call.1} parent=5 // pred_check_branch
      %187 = sbr.rel (%p185) target = $region16
    $region15: #{tpu_custom_call.1} parent=5 // pred_region
      // Predicated region
      $region17: #{tpu_custom_call.1} parent=15 // pred_check
        %p188 = pneg %p51
      $region18: #{tpu_custom_call.1} parent=15 // pred_check_branch
        %190 = sbr.rel (%p188) target = $region20
      $region19: #{tpu_custom_call.1} parent=15 // pred_region
        %s191 = smul.u32 %s18, 4
        %s192 = sadd.s32 %s191, %s19
        %p193 = scmp.lt.s32.totalorder %s192, 6
        %s194 = scalar_select %p193, %s192, 6
        %p195 = scmp.lt.s32.totalorder %s194, 6
        %s196 = scalar_select %p195, %s194, 6
        %s197 = smul.addr %s196, 8
        %s198 = scalar_lea.vmem %s0, %s197
        %s199 = smul.u32 %s18, 4
        %s200 = sadd.s32 %s199, %s19
        %p201 = scmp.lt.s32.totalorder %s200, 6
        %s202 = scalar_select %p201, %s200, 6
      $region20: #{tpu_custom_call.1} parent=15 // pred_fallthru
        _
      // Predicated region
      $region21: #{tpu_custom_call.1} parent=15 // pred_check
        %p203 = pneg %p85
      $region22: #{tpu_custom_call.1} parent=15 // pred_check_branch
        %205 = sbr.rel (%p203) target = $region24
      $region23: #{tpu_custom_call.1} parent=15 // pred_region
        %s206 = smul.u32 %s18, 4
        %s207 = sadd.s32 %s206, %s19
        %p208 = scmp.lt.s32.totalorder %s207, 6
        %s209 = scalar_select %p208, %s207, 6
        %p210 = scmp.lt.s32.totalorder %s209, 6
        %s211 = scalar_select %p210, %s209, 6
        %s212 = smul.addr %s211, 8
        %s213 = scalar_lea.vmem %s1, %s212
        %s214 = smul.u32 %s18, 4
        %s215 = sadd.s32 %s214, %s19
        %p216 = scmp.lt.s32.totalorder %s215, 6
        %s217 = scalar_select %p216, %s215, 6
      $region24: #{tpu_custom_call.1} parent=15 // pred_fallthru
        _
    $region16: #{tpu_custom_call.1} parent=5 // pred_fallthru
      _
    %p218 = scmp.le.s32.totalorder 1, %s11
    %p219 = scmp.lt.s32.totalorder %s11, 9
    %p220 = pnand %p218, %p219
    %p221 = pneg %p220
    // Predicated region
    $region25: #{tpu_custom_call.1} parent=5 // pred_check
      _
    $region26: #{tpu_custom_call.1} parent=5 // pred_check_branch
      %223 = sbr.rel (%p220) target = $region28
    $region27: #{tpu_custom_call.1} parent=5 // pred_region
      %s224 = ssub.s32 %s11, 1
      %s225 = smul.u32 %s20, 4
      %s226 = sadd.s32 %s225, %s21
      %p227 = scmp.lt.s32.totalorder %s226, 6
      %s228 = scalar_select %p227, %s226, 6
      %p229 = scmp.lt.s32.totalorder %s228, 6
      %s230 = scalar_select %p229, %s228, 6
      %s231 = smul.addr %s230, 8
      %s232 = scalar_lea.vmem %s0, %s231
      %p233 = pneg %p57
      %p234 = pneg %p54
      %s235 = smul.u32 %s20, 4
      %s236 = sadd.s32 %s235, %s21
      %p237 = scmp.lt.s32.totalorder %s236, 6
      %s238 = scalar_select %p237, %s236, 6
      %p239 = scmp.lt.s32.totalorder %s238, 6
      %s240 = scalar_select %p239, %s238, 6
      %s241 = smul.addr %s240, 8
      %s242 = scalar_lea.vmem %s1, %s241
      %p243 = pneg %p91
      %p244 = pneg %p88
      %p245 = pneg %p117
      %p246 = pneg %p114
      %p247 = scmp.lt.s32.totalorder %s20, 1
      %s248 = scalar_select %p247, %s20, 1
      %s249 = scalar_lea.vmem %s2, %s248
      %p250 = pneg %p143
      %p251 = pneg %p140
      %p252 = scmp.lt.s32.totalorder %s20, 1
      %s253 = scalar_select %p252, %s20, 1
      %s254 = scalar_lea.vmem %s3, %s253
      %p255 = pneg %p169
      %p256 = pneg %p166
      %p257 = scmp.lt.s32.totalorder %s20, 1
      %s258 = scalar_select %p257, %s20, 1
      %s259 = scalar_lea.vmem %s4, %s258
      %s260 = smul.u32 %s20, 4
      %s261 = sadd.s32 %s260, %s21
      %p262 = scmp.lt.s32.totalorder %s261, 6
      %s263 = scalar_select %p262, %s261, 6
      %p264 = scmp.lt.s32.totalorder %s263, 6
      %s265 = scalar_select %p264, %s263, 6
      %s266 = smul.addr %s265, 8
      %s267 = scalar_lea.vmem %s0, %s266
      %s268 = smul.u32 %s20, 4
      %s269 = sadd.s32 %s268, %s21
      %p270 = scmp.lt.s32.totalorder %s269, 6
      %s271 = scalar_select %p270, %s269, 6
      %s272 = smul.u32 %s20, 4
      %s273 = sadd.s32 %s272, %s21
      %p274 = scmp.lt.s32.totalorder %s273, 6
      %s275 = scalar_select %p274, %s273, 6
      %p276 = scmp.lt.s32.totalorder %s275, 6
      %s277 = scalar_select %p276, %s275, 6
      %s278 = smul.addr %s277, 8
      %s279 = scalar_lea.vmem %s1, %s278
      %s280 = smul.u32 %s20, 4
      %s281 = sadd.s32 %s280, %s21
      %p282 = scmp.lt.s32.totalorder %s281, 6
      %s283 = scalar_select %p282, %s281, 6
      %p284 = scmp.lt.s32.totalorder %s20, 1
      %s285 = scalar_select %p284, %s20, 1
      %s286 = scalar_lea.vmem %s2, %s285
      %p287 = scmp.lt.s32.totalorder %s20, 1
      %s288 = scalar_select %p287, %s20, 1
      %s289 = scalar_lea.vmem %s3, %s288
      %p290 = scmp.lt.s32.totalorder %s20, 1
      %s291 = scalar_select %p290, %s20, 1
      %s292 = scalar_lea.vmem %s4, %s291
      %p293 = scmp.eq.s32.totalorder %s21, 0
      // Predicated region
      $region29: #{tpu_custom_call.1} parent=27 // pred_check
        %p294 = pneg %p293
      $region30: #{tpu_custom_call.1} parent=27 // pred_check_branch
        %296 = sbr.rel (%p294) target = $region32
      $region31: #{tpu_custom_call.1} parent=27 // pred_region
        %vm297 = vcmask 0
        %298 = vst.msk [vmem:[%s286] sm:$0x1] %vm297, 0.0
        %299 = vst.msk [vmem:[%s289] sm:$0x1] %vm297, 0.0
        %300 = vst.msk [vmem:[%s292] sm:$0x1] %vm297, 0.0
      $region32: #{tpu_custom_call.1} parent=27 // pred_fallthru
        _
      %v301 = vld [vmem:[%s267] sm:$0xff]
      %v302 = vld [vmem:[%s279] sm:$0xff]
      %s303 = smul.u32 %s20, 4
      %s304 = sadd.s32 %s303, %s21
      %v305 = vlaneseq
      %v306 = vshrl.u32 %v305, 7
      %s307 = smul.u32 %s304, 8
      %v308 = vstv %s307
      %v309 = vadd.s32 %v306, %v308
      %vm310 = vcmp.lt.s32.totalorder %v309, 50
      %v311 = vmax.f32 %v301, -15.0
      %v312 = vmin.f32 %v311, 15.0
      %313 = vmax.xlane.f32.xlu0 %v312
      %v314 = vpop.xlane.xlu0 %313
      %v315 = vsub.f32 %v312, %v314
      %v316 = vmul.f32 %v315, 1.442695
      %v317 = vpow.pop %v316
      %318 = vadd.xlane.f32.xlu0 %v317
      %v319 = vpop.xlane.xlu0 %318
      %v320 = vrcp.pop %v319
      %v321 = vmul.f32 %v317, %v320
      %v322 = vmax.f32 %v321, 1e-07
      %v323 = vlaneseq
      %v324 = vand.u32 %v323, 127
      %325 = vadd.xlane.f32.xlu0 %v322
      %v326 = vpop.xlane.xlu0 %325
      %327 = vset.pattern.permute.xlu0 0
      %328 = vperm.xlu0 %327, %v302
      %v329 = vpop.permute.xlu0 %328
      %vm330 = vcmp.eq.s32.totalorder %v324, %v329
      %v331 = vsel %vm330, %v322, 0.0
      %332 = vadd.xlane.f32.xlu0 %v331
      %v333 = vpop.xlane.xlu0 %332
      %v334 = vmul.f32 %v326, 0.00078125
      %v335 = vmul.f32 %v333, 0.9
      %v336 = vadd.f32 %v334, %v335
      %v337 = vmax.f32 %v336, 1e-07
      %v338 = vlog2.pop %v337
      %v339 = vmul.f32 %v338, 0.6931472
      %v340 = vmul.f32 %v339, 0.449
      %v341 = vmul.f32 %v340, 1.442695
      %v342 = vpow.pop %v341
      %v343 = vsub.f32 1.0, %v342
      %v344 = vrcp.pop 0.449
      %v345 = vmul.f32 %v343, %v344
      %v346 = vsel %vm310, %v345, 0.0
      %vm347 = vcmask 7168
      %v348 = vsel %vm347, %v346, 0.0
      %349 = vadd.xlane.f32.xlu0 %v348
      %v350 = vpop.xlane.xlu0 %349
      %v351 = vrot.slane %v350, 4
      %v352 = vadd.f32 %v350, %v351
      %v353 = vrot.slane %v352, 2
      %v354 = vadd.f32 %v352, %v353
      %v355 = vrot.slane %v354, 1
      %v356 = vadd.f32 %v354, %v355
      %s357 = vtos %v356
      %358 = vmax.xlane.f32.xlu0 %v322
      %v359 = vpop.xlane.xlu0 %358
      %vm360 = vcmp.eq.f32.partialorder %v322, %v359
      %v361 = vsel %vm360, 1.0, 0.0
      %362 = vadd.xlane.f32.xlu0 %v361
      %v363 = vpop.xlane.xlu0 %362
      %v364 = vmin.f32 %v363, 3.0
      %v365 = vmul.f32 %v364, %v359
      %v366 = vadd.f32 %v365, 0.0
      %v367 = vsub.f32 3.0, %v364
      %v368 = vsel %vm360, -1.0, %v322
      %369 = vmax.xlane.f32.xlu0 %v368
      %v370 = vpop.xlane.xlu0 %369
      %vm371 = vcmp.eq.f32.partialorder %v368, %v370
      %v372 = vsel %vm371, 1.0, 0.0
      %373 = vadd.xlane.f32.xlu0 %v372
      %v374 = vpop.xlane.xlu0 %373
      %v375 = vmin.f32 %v374, %v367
      %v376 = vmul.f32 %v375, %v370
      %v377 = vadd.f32 %v366, %v376
      %v378 = vsub.f32 %v367, %v375
      %v379 = vsel %vm371, -1.0, %v368
      %380 = vmax.xlane.f32.xlu0 %v379
      %v381 = vpop.xlane.xlu0 %380
      %vm382 = vcmp.eq.f32.partialorder %v379, %v381
      %v383 = vsel %vm382, 1.0, 0.0
      %384 = vadd.xlane.f32.xlu0 %v383
      %v385 = vpop.xlane.xlu0 %384
      %v386 = vmin.f32 %v385, %v378
      %v387 = vmul.f32 %v386, %v381
      %v388 = vadd.f32 %v377, %v387
      %v389 = vsub.f32 3.0, %v388
      %vm390 = vcmp.lt.f32.partialorder %v389, 0.42
      %vm391 = vmand %vm390, %vm310
      %v392 = vsel %vm391, %v389, 0.0
      %v393 = vsel %vm347, %v392, 0.0
      %394 = vadd.xlane.f32.xlu0 %v393
      %v395 = vpop.xlane.xlu0 %394
      %v396 = vrot.slane %v395, 4
      %v397 = vadd.f32 %v395, %v396
      %v398 = vrot.slane %v397, 2
      %v399 = vadd.f32 %v397, %v398
      %v400 = vrot.slane %v399, 1
      %v401 = vadd.f32 %v399, %v400
      %s402 = vtos %v401
      %v403 = vsel %vm391, 1.0, 0.0
      %v404 = vsel %vm347, %v403, 0.0
      %405 = vadd.xlane.f32.xlu0 %v404
      %v406 = vpop.xlane.xlu0 %405
      %v407 = vrot.slane %v406, 4
      %v408 = vadd.f32 %v406, %v407
      %v409 = vrot.slane %v408, 2
      %v410 = vadd.f32 %v408, %v409
      %v411 = vrot.slane %v410, 1
      %v412 = vadd.f32 %v410, %v411
      %s413 = vtos %v412
      %v414 = vld [vmem:[%s286] sm:$0x1]
      %v415 = vstv %s357
      %v416 = vadd.f32 %v414, %v415
      %vm417 = vcmask 0
      %418 = vst.msk [vmem:[%s286] sm:$0x1] %vm417, %v416
      %v419 = vld [vmem:[%s289] sm:$0x1]
      %v420 = vstv %s402
      %v421 = vadd.f32 %v419, %v420
      %422 = vst.msk [vmem:[%s289] sm:$0x1] %vm417, %v421
      %v423 = vld [vmem:[%s292] sm:$0x1]
      %v424 = vstv %s413
      %v425 = vadd.f32 %v423, %v424
      %426 = vst.msk [vmem:[%s292] sm:$0x1] %vm417, %v425
      %p427 = scmp.lt.s32.totalorder %s20, 1
      %s428 = scalar_select %p427, %s20, 1
      %s429 = scalar_lea.vmem %s2, %s428
      %p430 = scmp.lt.s32.totalorder %s20, 1
      %s431 = scalar_select %p430, %s20, 1
      %s432 = scalar_lea.vmem %s3, %s431
      %p433 = scmp.lt.s32.totalorder %s20, 1
      %s434 = scalar_select %p433, %s20, 1
      %s435 = scalar_lea.vmem %s4, %s434
      // Predicated region
      $region33: #{tpu_custom_call.1} parent=27 // pred_check
        %p436 = pneg %p114
      $region34: #{tpu_custom_call.1} parent=27 // pred_check_branch
        %438 = sbr.rel (%p436) target = $region36
      $region35: #{tpu_custom_call.1} parent=27 // pred_region
        _
      $region36: #{tpu_custom_call.1} parent=27 // pred_fallthru
        _
      // Predicated region
      $region37: #{tpu_custom_call.1} parent=27 // pred_check
        %p439 = pneg %p140
      $region38: #{tpu_custom_call.1} parent=27 // pred_check_branch
        %441 = sbr.rel (%p439) target = $region40
      $region39: #{tpu_custom_call.1} parent=27 // pred_region
        _
      $region40: #{tpu_custom_call.1} parent=27 // pred_fallthru
        _
      // Predicated region
      $region41: #{tpu_custom_call.1} parent=27 // pred_check
        %p442 = pneg %p166
      $region42: #{tpu_custom_call.1} parent=27 // pred_check_branch
        %444 = sbr.rel (%p442) target = $region44
      $region43: #{tpu_custom_call.1} parent=27 // pred_region
        _
      $region44: #{tpu_custom_call.1} parent=27 // pred_fallthru
        _
    $region28: #{tpu_custom_call.1} parent=5 // pred_fallthru
      _
    %p445 = scmp.le.s32.totalorder 2, %s11
    // Predicated region
    $region45: #{tpu_custom_call.1} parent=5 // pred_check
      %p446 = pneg %p445
    $region46: #{tpu_custom_call.1} parent=5 // pred_check_branch
      %448 = sbr.rel (%p446) target = $region48
    $region47: #{tpu_custom_call.1} parent=5 // pred_region
      %s449 = ssub.s32 %s11, 2
      // Predicated region
      $region49: #{tpu_custom_call.1} parent=47 // pred_check
        %p450 = pneg %p120
      $region50: #{tpu_custom_call.1} parent=47 // pred_check_branch
        %452 = sbr.rel (%p450) target = $region52
      $region51: #{tpu_custom_call.1} parent=47 // pred_region
        %p453 = scmp.lt.s32.totalorder %s22, 1
        %s454 = scalar_select %p453, %s22, 1
        %s455 = scalar_lea.vmem %s2, %s454
      $region52: #{tpu_custom_call.1} parent=47 // pred_fallthru
        _
      // Predicated region
      $region53: #{tpu_custom_call.1} parent=47 // pred_check
        %p456 = pneg %p146
      $region54: #{tpu_custom_call.1} parent=47 // pred_check_branch
        %458 = sbr.rel (%p456) target = $region56
      $region55: #{tpu_custom_call.1} parent=47 // pred_region
        %p459 = scmp.lt.s32.totalorder %s22, 1
        %s460 = scalar_select %p459, %s22, 1
        %s461 = scalar_lea.vmem %s3, %s460
      $region56: #{tpu_custom_call.1} parent=47 // pred_fallthru
        _
      // Predicated region
      $region57: #{tpu_custom_call.1} parent=47 // pred_check
        %p462 = pneg %p172
      $region58: #{tpu_custom_call.1} parent=47 // pred_check_branch
        %464 = sbr.rel (%p462) target = $region60
      $region59: #{tpu_custom_call.1} parent=47 // pred_region
        %p465 = scmp.lt.s32.totalorder %s22, 1
        %s466 = scalar_select %p465, %s22, 1
        %s467 = scalar_lea.vmem %s4, %s466
      $region60: #{tpu_custom_call.1} parent=47 // pred_fallthru
        _
    $region48: #{tpu_custom_call.1} parent=5 // pred_fallthru
      _
  $region6: #{tpu_custom_call.1} parent=0 // loop_footer
    %s15 = sadd.s32 1, %s11
  $region7: #{tpu_custom_call.1} parent=0 // loop_footer_branch
    %10 = sbr.rel target = $region3
  $region8: #{tpu_custom_call.1} parent=0 // loop_exit
    _

</llo_original>
